<compile_context>
chip_gen: v7x
topology: tpu7x:2x2x1
jax: 0.10.0
libtpu: 0.0.40
codegen_flags: <defaults>
</compile_context>

<pallas_src>
import functools

import jax
import jax.numpy as jnp
from jax import lax
from jax.experimental import pallas as pl
from jax.experimental.pallas import tpu as pltpu


# Tile targets: 256-multiples fill the 2x256x256 MXUs on v6e/v7x (128 suffices
# on v5e's 4x128x128); with d_out-wide K/V tiles this fits comfortably inside
# v7x's 64 MiB physical VMEM even with double-buffered streaming inputs.
_TQ_TARGET = 256
_TK_TARGET = 256
_TM_TARGET = 256                      # projection row tile
_VMEM_LIMIT = 48 * 1024 * 1024        # > v5e 16 MiB default, < v7x 64 MiB physical


def _pick_tile(dim, target):
    """Largest MXU-friendly tile that divides `dim`; falls back to the full dim
    (single block) for small / odd sizes such as the toy shapes below."""
    for t in (target, 128, 8):
        if t <= dim and dim % t == 0:
            return t
    return dim


def _qkv_proj_kernel(x_ref, wqkv_ref, qkv_ref):
    # qkv = x @ Wqkv.T : contract the last dims of both operands (no materialized
    # transpose), accumulate on the MXU in f32, store in the activation dtype so
    # the downstream attention dots get native (bf16-ready) MXU operands.
    qkv = lax.dot_general(
        x_ref[...], wqkv_ref[...],
        dimension_numbers=(((1,), (1,)), ((), ())),
        preferred_element_type=jnp.float32,
    )
    qkv_ref[...] = qkv.astype(qkv_ref.dtype)


def _flash_attn_kernel(q_ref, k_ref, v_ref, o_ref, m_sc, l_sc, acc_sc, *, scale):
    kv = pl.program_id(1)

    @pl.when(kv == 0)
    def _():
        m_sc[...] = jnp.full_like(m_sc, -jnp.inf)
        l_sc[...] = jnp.zeros_like(l_sc)
        acc_sc[...] = jnp.zeros_like(acc_sc)

    # Compile-time-constant 1/sqrt(d_out) applied to the small q tile.
    q = q_ref[...] * scale                                   # (tq, d), x.dtype

    # scores = q @ k.T via last-dim x last-dim contraction; MXU operands stay in
    # the activation dtype, accumulation in f32.
    s = lax.dot_general(
        q, k_ref[...],
        dimension_numbers=(((1,), (1,)), ((), ())),
        preferred_element_type=jnp.float32,
    )                                                        # (tq, tk) f32

    # Online softmax (statistics kept in f32).
    m_prev = m_sc[...]
    m_new = jnp.maximum(m_prev, s.max(axis=-1, keepdims=True))
    alpha = jnp.exp(m_prev - m_new)
    p = jnp.exp(s - m_new)
    l_sc[...] = alpha * l_sc[...] + p.sum(axis=-1, keepdims=True)
    # Deferred normalization: accumulate unnormalized p @ v (p cast to the MXU
    # operand dtype, f32 accumulation); scale once at the end.
    acc_sc[...] = alpha * acc_sc[...] + jnp.dot(
        p.astype(v_ref.dtype), v_ref[...], preferred_element_type=jnp.float32)
    m_sc[...] = m_new

    @pl.when(kv == pl.num_programs(1) - 1)
    def _():
        inv_l = pl.reciprocal(l_sc[...], approx=True)        # EUP slot, VALU-free
        o_ref[...] = (acc_sc[...] * inv_l).astype(o_ref.dtype)


def self_attention_v2(x, w_query, w_key, w_value):
    """x: (S, d_in); w_*: (d_out, d_in) PyTorch nn.Linear layout. Returns (S, d_out)."""
    S, d_in = x.shape
    d_out = w_query.shape[0]

    # ---- 1) Fused QKV projection (one lane-denser weight operand). ----
    wqkv = jnp.concatenate([w_query, w_key, w_value], axis=0)   # (3*d_out, d_in)
    tm = _pick_tile(S, _TM_TARGET)

    qkv = pl.pallas_call(
        _qkv_proj_kernel,
        out_shape=jax.ShapeDtypeStruct((S, 3 * d_out), x.dtype),
        grid_spec=pltpu.PrefetchScalarGridSpec(
            num_scalar_prefetch=0,
            grid=(S // tm,),
            in_specs=[
                pl.BlockSpec((tm, d_in), lambda i: (i, 0)),
                pl.BlockSpec((3 * d_out, d_in), lambda i: (0, 0)),  # weights resident
            ],
            out_specs=pl.BlockSpec((tm, 3 * d_out), lambda i: (i, 0)),
        ),
        compiler_params=pltpu.CompilerParams(
            dimension_semantics=("parallel",),
            vmem_limit_bytes=_VMEM_LIMIT,
        ),
    )(x, wqkv)

    # Split outside the kernel: free XLA layout plumbing, and it avoids
    # non-128-aligned intra-kernel slices of the fused qkv block.
    q = qkv[:, :d_out]
    k = qkv[:, d_out:2 * d_out]
    v = qkv[:, 2 * d_out:]

    # ---- 2) Flash-style attention: (S, S) scores never materialize. ----
    tq = _pick_tile(S, _TQ_TARGET)
    tk = _pick_tile(S, _TK_TARGET)
    scale = 1.0 / (float(d_out) ** 0.5)
    kernel = functools.partial(_flash_attn_kernel, scale=scale)

    # TODO(synk): for production, pad d_out (or pack multiple heads) to a
    # multiple of 128 so output stores are lane-dense (unmasked vst) instead of
    # masked vst.msk, and consider pl.Buffered(3) on the K/V specs for v5e.
    return pl.pallas_call(
        kernel,
        out_shape=jax.ShapeDtypeStruct((S, d_out), x.dtype),
        grid_spec=pltpu.PrefetchScalarGridSpec(
            num_scalar_prefetch=0,
            grid=(S // tq, S // tk),                 # kv (reduction) axis last
            in_specs=[
                pl.BlockSpec((tq, d_out), lambda qi, ki: (qi, 0)),
                pl.BlockSpec((tk, d_out), lambda qi, ki: (ki, 0)),
                pl.BlockSpec((tk, d_out), lambda qi, ki: (ki, 0)),
            ],
            out_specs=pl.BlockSpec((tq, d_out), lambda qi, ki: (qi, 0)),
            scratch_shapes=[
                pltpu.VMEM((tq, 1), jnp.float32),        # running max m
                pltpu.VMEM((tq, 1), jnp.float32),        # running denom l
                pltpu.VMEM((tq, d_out), jnp.float32),    # unnormalized output acc
            ],
        ),
        compiler_params=pltpu.CompilerParams(
            # q axis shards across v7x's 2 TensorCores; harmless on v5e/v6e.
            dimension_semantics=("parallel", "arbitrary"),
            vmem_limit_bytes=_VMEM_LIMIT,
        ),
    )(q, k, v)


def _reference(x, wq, wk, wv):
    q = x @ wq.T
    k = x @ wk.T
    v = x @ wv.T
    scores = q @ k.T / jnp.sqrt(jnp.float32(k.shape[-1]))
    w = jax.nn.softmax(scores, axis=-1)
    return w @ v


if __name__ == "__main__":
    key = jax.random.PRNGKey(0)
    k_x, k_q, k_k, k_v = jax.random.split(key, 4)

    seq, d_in, d_out = 8, 32, 16

    x = jax.random.normal(k_x, (seq, d_in), dtype=jnp.float32)
    # Deterministic "Linear" weights, PyTorch layout (d_out, d_in), uniform(-b, b)
    bound = 1.0 / (float(d_in) ** 0.5)
    w_query = jax.random.uniform(k_q, (d_out, d_in), jnp.float32, -bound, bound)
    w_key = jax.random.uniform(k_k, (d_out, d_in), jnp.float32, -bound, bound)
    w_value = jax.random.uniform(k_v, (d_out, d_in), jnp.float32, -bound, bound)

    out = self_attention_v2(x, w_query, w_key, w_value)
    out = jax.block_until_ready(out)

    ref = _reference(x, w_query, w_key, w_value)
    assert out.shape == (seq, d_out)
    # Tolerance relaxed slightly for the approximate (EUP) softmax reciprocal.
    assert jnp.allclose(out, ref, atol=2e-3, rtol=2e-3), "mismatch vs reference"
    print("KERNEL_OK")
</pallas_src>

<mosaic_0001>
module attributes {stable_mosaic.version = 11 : i64} {
  func.func @_qkv_proj_kernel(%arg0: i32, %arg1: memref<8x32xf32, #tpu.memory_space<vmem>>, %arg2: memref<48x32xf32, #tpu.memory_space<vmem>>, %arg3: memref<8x48xf32, #tpu.memory_space<vmem>>) attributes {dimension_semantics = [#tpu.dimension_semantics<parallel>], iteration_bounds = array<i64: 1>, scalar_prefetch = 0 : i64, scratch_operands = 0 : i64, tpu.core_type = #tpu.core_type<tc>, window_params = [{transform_indices = @transform_0, window_bounds = array<i64: 8, 32>}, {pipeline_mode = #tpu.pipeline_mode<synchronous>, transform_indices = @transform_1, window_bounds = array<i64: 48, 32>}, {transform_indices = @transform_2, window_bounds = array<i64: 8, 48>}]} {
    %c0 = arith.constant 0 : index
    %c0_0 = arith.constant 0 : index
    %0 = vector.load %arg1[%c0, %c0_0] : memref<8x32xf32, #tpu.memory_space<vmem>>, vector<8x32xf32>
    %c0_1 = arith.constant 0 : index
    %c0_2 = arith.constant 0 : index
    %1 = vector.load %arg2[%c0_1, %c0_2] : memref<48x32xf32, #tpu.memory_space<vmem>>, vector<48x32xf32>
    %cst = arith.constant dense<0.000000e+00> : vector<8x48xf32>
    %2 = tpu.matmul %0, %1, %cst {dimension_numbers = #tpu.dot_dimension_numbers<[1], [1], [0], [0], [0, 0, 1, 0], [], []>} : vector<8x32xf32>, vector<48x32xf32>, vector<8x48xf32> -> vector<8x48xf32>
    %c0_3 = arith.constant 0 : index
    %c0_4 = arith.constant 0 : index
    %3 = vector.load %arg3[%c0_3, %c0_4] : memref<8x48xf32, #tpu.memory_space<vmem>>, vector<8x48xf32>
    tpu.vector_store %arg3[%c0_3, %c0_4], %2 {strides = array<i32>} : memref<8x48xf32, #tpu.memory_space<vmem>>, vector<8x48xf32>,
    return
  }
  func.func @transform_0(%arg0: i32) -> (i32, i32) {
    %c0_i32 = arith.constant 0 : i32
    %c0_i32_0 = arith.constant 0 : i32
    return %arg0, %c0_i32 : i32, i32
  }
  func.func @transform_1(%arg0: i32) -> (i32, i32) {
    %c0_i32 = arith.constant 0 : i32
    %c0_i32_0 = arith.constant 0 : i32
    %c0_i32_1 = arith.constant 0 : i32
    return %c0_i32, %c0_i32_0 : i32, i32
  }
  func.func @transform_2(%arg0: i32) -> (i32, i32) {
    %c0_i32 = arith.constant 0 : i32
    %c0_i32_0 = arith.constant 0 : i32
    return %arg0, %c0_i32 : i32, i32
  }
}

</mosaic_0001>

<llo_original>
// kernel: tpu_custom_call.1
$region0: #{tpu_custom_call.1}
  #allocation0 [shape = 'u32[]', space=smem, size = 0x4, offset = 0x4, fixed_abs, tag = 'smem constant byte address 0x4 - core index']
  #allocation1 [shape = 'u32[144,128]{1,0:T(1,128)}', space=vmem, size = 0x12000, scoped, tag = 'internal scratch']
  %s0 = inlined_call_operand.vmem [shape: f32[8,32], index: 0, kind: input, shape index: {}]
  %s1 = inlined_call_operand.vmem [shape: f32[48,32], index: 1, kind: input, shape index: {}]
  %s2 = inlined_call_operand.hbm [shape: f32[8,48], index: 2, kind: output, shape index: {}]
  %s3 = sld [smem:[#allocation0]]
  $region18: #{tpu_custom_call.1} parent=0
    _
  %s5 = ssub.s32 1, %s3
  %s6 = scalar_select 0, %s5, %s3
  $region1: #{tpu_custom_call.1} parent=0
    #allocation2 [shape = 'u8[4096]{0}', space=vmem, size = 0x1000, scoped, tag = 'output window, operand 0, single buffered']
    #allocation3 [shape = 's32[1]{0}', space=sflag, size = 0x4, scoped, tag = 'scoped memory for tpu_custom_call.1']
    %7 = vsyncpa [#allocation3], 0
    // Predicated region
    $region2: #{tpu_custom_call.1} parent=1 // pred_check
      _
    $region3: #{tpu_custom_call.1} parent=1 // pred_check_branch
      %9 = sbr.rel (0) target = $region5
    $region4: #{tpu_custom_call.1} parent=1 // pred_region
      _
    $region5: #{tpu_custom_call.1} parent=1 // pred_fallthru
      _
    // Predicated region
    $region6: #{tpu_custom_call.1} parent=1 // pred_check
      _
    $region7: #{tpu_custom_call.1} parent=1 // pred_check_branch
      %11 = sbr.rel (0) target = $region9
    $region8: #{tpu_custom_call.1} parent=1 // pred_region
      _
    $region9: #{tpu_custom_call.1} parent=1 // pred_fallthru
      _
    %v12 = vld [vmem:[%s0] sm:$0xff]
    %v13 = vld [vmem:[%s1] sm:$0xff]
    %v14 = vld [vmem:[%s1 + $0x8] sm:$0xff]
    %v15 = vld [vmem:[%s1 + $0x10] sm:$0xff]
    %v16 = vld [vmem:[%s1 + $0x18] sm:$0xff]
    %v17 = vld [vmem:[%s1 + $0x20] sm:$0xff]
    %v18 = vld [vmem:[%s1 + $0x28] sm:$0xff]
    %vm19 = vcmask 261120
    %v21 = vsel %vm19, %v12, 0
    %v24 = vsel %vm19, %v13, 0
    %v27 = vsel %vm19, %v14, 0
    %v30 = vsel %vm19, %v15, 0
    %v33 = vsel %vm19, %v16, 0
    %v36 = vsel %vm19, %v17, 0
    %v39 = vsel %vm19, %v18, 0
    %41 = vmatprep.subr.mxu0 0.0
    %42 = vmatpush1.xpose.msra.mxu0 %v24
    %43 = vmatprep.subr.mxu0 0.0
    %44 = vmatpush1.xpose.msra.mxu0 %v27
    %45 = vmatprep.subr.mxu0 0.0
    %46 = vmatpush1.xpose.msra.mxu0 %v30
    %47 = vmatprep.subr.mxu0 0.0
    %48 = vmatpush1.xpose.msra.mxu0 %v33
    %49 = vmatprep.subr.mxu0 0.0
    %50 = vmatpush1.xpose.msra.mxu0 %v36
    %51 = vmatprep.subr.mxu0 0.0
    %52 = vmatpush1.xpose.msra.mxu0 %v39
    %53 = vmatprep.subr.mxu0 0.0
    %54 = vmatpush1.xpose.msra.mxu0 0.0
    %55 = vmatprep.subr.mxu0 0.0
    %56 = vmatpush1.xpose.msra.mxu0 0.0
    %57 = vmatprep.subr.mxu0 0.0
    %58 = vmatpush1.xpose.msra.mxu0 0.0
    %59 = vmatprep.subr.mxu0 0.0
    %60 = vmatpush1.xpose.msra.mxu0 0.0
    %61 = vmatprep.subr.mxu0 0.0
    %62 = vmatpush1.xpose.msra.mxu0 0.0
    %63 = vmatprep.subr.mxu0 0.0
    %64 = vmatpush1.xpose.msra.mxu0 0.0
    %65 = vmatprep.subr.mxu0 0.0
    %66 = vmatpush1.xpose.msra.mxu0 0.0
    %67 = vmatprep.subr.mxu0 0.0
    %68 = vmatpush1.xpose.msra.mxu0 0.0
    %69 = vmatprep.subr.mxu0 0.0
    %70 = vmatpush1.xpose.msra.mxu0 0.0
    %71 = vmatprep.subr.mxu0 0.0
    %72 = vmatpush1.xpose.msra.mxu0 0.0
    %73 = vmatprep.subr.mxu0 0.0
    %74 = vmatpush1.xpose.msra.mxu0 0.0
    %75 = vmatprep.subr.mxu0 0.0
    %76 = vmatpush1.xpose.msra.mxu0 0.0
    %77 = vmatprep.subr.mxu0 0.0
    %78 = vmatpush1.xpose.msra.mxu0 0.0
    %79 = vmatprep.subr.mxu0 0.0
    %80 = vmatpush1.xpose.msra.mxu0 0.0
    %81 = vmatprep.subr.mxu0 0.0
    %82 = vmatpush1.xpose.msra.mxu0 0.0
    %83 = vmatprep.subr.mxu0 0.0
    %84 = vmatpush1.xpose.msra.mxu0 0.0
    %85 = vmatprep.subr.mxu0 0.0
    %86 = vmatpush1.xpose.msra.mxu0 0.0
    %87 = vmatprep.subr.mxu0 0.0
    %88 = vmatpush1.xpose.msra.mxu0 0.0
    %89 = vmatprep.subr.mxu0 0.0
    %90 = vmatpush1.xpose.msra.mxu0 0.0
    %91 = vmatprep.subr.mxu0 0.0
    %92 = vmatpush1.xpose.msra.mxu0 0.0
    %93 = vmatprep.subr.mxu0 0.0
    %94 = vmatpush1.xpose.msra.mxu0 0.0
    %95 = vmatprep.subr.mxu0 0.0
    %96 = vmatpush1.xpose.msra.mxu0 0.0
    %97 = vmatprep.subr.mxu0 0.0
    %98 = vmatpush1.xpose.msra.mxu0 0.0
    %99 = vmatprep.subr.mxu0 0.0
    %100 = vmatpush1.xpose.msra.mxu0 0.0
    %101 = vmatprep.subr.mxu0 0.0
    %102 = vmatpush1.xpose.msra.mxu0 0.0
    %103 = vmatprep.subr.mxu0 0.0
    %104 = vmatpush1.xpose.msra.mxu0 0.0
    %105 = vmatprep.mubr.f32.mxu0 0.0
    %106 = vmatmul.mubr.f32.gmra.mrb[0].mxu0 %v21
    %v107 = vpop.f32.mrb[0].mxu0
    %v108 = vadd.f32 0.0, %v107
    %v109 = vpop.f32.mrb[0].mxu0
    %110 = vdwg.mxu0
    %vm111 = vcmask 392192
    %112 = vst.msk [vmem:[#allocation2] sm:$0xff] %vm111, %v108
    // Predicated region
    $region10: #{tpu_custom_call.1} parent=1 // pred_check
      _
    $region11: #{tpu_custom_call.1} parent=1 // pred_check_branch
      %114 = sbr.rel (0) target = $region13
    $region12: #{tpu_custom_call.1} parent=1 // pred_region
      %s116 = ssub.s32 128, 128
      %117 = vsyncadd [#allocation3], %s116
      %s119 = sshll.u32 [#allocation2], 4
      %s120 = int_to_ptr.vmem [resolvable:$true] %s119
      %122 = dma.vmem_to_hbm [thread:$0]  %s120, 128, %s2, [#allocation3]
    $region13: #{tpu_custom_call.1} parent=1 // pred_fallthru
      _
    // Predicated region
    $region14: #{tpu_custom_call.1} parent=1 // pred_check
      _
    $region15: #{tpu_custom_call.1} parent=1 // pred_check_branch
      %124 = sbr.rel (0) target = $region17
    $region16: #{tpu_custom_call.1} parent=1 // pred_region
      %125 = dma.done [#allocation3], 128
    $region17: #{tpu_custom_call.1} parent=1 // pred_fallthru
      _
    %126 = vsyncpa [#allocation3], 1

</llo_original>
